<compile_context>
chip_gen: v6e
topology: v6e:2x2x1
jax: 0.10.0
libtpu: 0.0.40
codegen_flags: <defaults>
</compile_context>

<pallas_src>
import jax
import jax.numpy as jnp
from jax.experimental import pallas as pl
from jax.experimental.pallas import tpu as pltpu


def encoder_kernel(xs_ref, xn_ref, ws_ref, wn_ref, o_ref):
    # xs_ref/xn_ref: [tn, F] bf16 activation tiles (self / neighbor-mean).
    # ws_ref/wn_ref: [E, F]  bf16 resident weight halves.
    # o_ref:         [E, tn] f32 output tile (lane axis = tn -> dense stores).
    acc = jax.lax.dot_general(
        ws_ref[...], xs_ref[...],
        dimension_numbers=(((1,), (1,)), ((), ())),
        preferred_element_type=jnp.float32)
    acc = acc + jax.lax.dot_general(
        wn_ref[...], xn_ref[...],
        dimension_numbers=(((1,), (1,)), ((), ())),
        preferred_element_type=jnp.float32)
    o_ref[...] = jnp.maximum(acc, 0.0).astype(o_ref.dtype)


def _vmem_budget_bytes():
    """~40% of this generation's VMEM (128 MiB on v5e/v6e, 64 MiB on v7x)."""
    try:
        cap = pltpu.get_tpu_info().vmem_capacity_bytes
        return max(16 << 20, int(cap * 0.4))
    except Exception:
        return 24 << 20  # conservative fallback: safe on every generation


def _choose_tile_n(n, feat_dim, embed_dim, budget, max_tile=2048):
    """Largest 128-aligned node-axis tile fitting the VMEM budget."""
    # Per-row bytes (double-buffered): 2 bf16 activation inputs + f32 output.
    per_row = 2 * (2 * feat_dim * 2) + 2 * (embed_dim * 4)
    # Resident bf16 weight halves (counted double-buffered, conservative).
    fixed = 2 * (2 * embed_dim * feat_dim * 2)
    fit = max(128, (budget - fixed) // per_row)
    tile = max(128, (min(max_tile, fit) // 128) * 128)
    if n <= tile:
        if n >= 256:
            # Split small batches into >=2 lane-aligned blocks so both v7x
            # TensorCores get work; blocks stay multiples of 128 lanes.
            half = (n + 1) // 2
            tile = 128 * ((half + 127) // 128)
        else:
            # Single block covering the full axis (exempt from (8,128) rule).
            tile = n
    return int(tile)


def encoder_forward(self_feats, neigh_mean, weight, *, max_tile_n=2048):
    """relu(weight @ cat([self_feats, neigh_mean], 1).T)  ->  [E, N]."""
    N, F = self_feats.shape
    E, two_f = weight.shape
    assert two_f == 2 * F

    # bf16 operands: halves HBM->VMEM traffic and feeds the MXU natively; the
    # casts fuse into the upstream gather/mean, so no extra activation pass.
    xs = self_feats.astype(jnp.bfloat16)                     # [N, F]
    xn = neigh_mean.astype(jnp.bfloat16)                     # [N, F]
    ws = weight[:, :F].astype(jnp.bfloat16)                  # [E, F] (self half)
    wn = weight[:, F:].astype(jnp.bfloat16)                  # [E, F] (neigh half)

    budget = _vmem_budget_bytes()
    tn = _choose_tile_n(N, F, E, budget, max_tile=max_tile_n)
    grid_n = (N + tn - 1) // tn

    # Raise the scoped VMEM limit to cover the chosen tiles (plus slack); the
    # budget already keeps this well under each generation's physical VMEM.
    # TODO(synk): for very large E*F the resident weight halves would need an
    # E grid axis (te multiple of 256) instead of living fully in VMEM.
    needed = 2 * (2 * E * F * 2) + tn * (2 * (2 * F * 2) + 2 * E * 4)
    vmem_limit = int(max(needed + (2 << 20), 16 << 20))

    out = pl.pallas_call(
        encoder_kernel,
        out_shape=jax.ShapeDtypeStruct((E, N), jnp.float32),
        grid_spec=pltpu.PrefetchScalarGridSpec(
            num_scalar_prefetch=0,
            grid=(grid_n,),
            in_specs=[
                pl.BlockSpec((tn, F), lambda i: (i, 0)),     # self-feature tile
                pl.BlockSpec((tn, F), lambda i: (i, 0)),     # neigh-mean tile
                pl.BlockSpec((E, F), lambda i: (0, 0)),      # resident W_self
                pl.BlockSpec((E, F), lambda i: (0, 0)),      # resident W_neigh
            ],
            out_specs=pl.BlockSpec((E, tn), lambda i: (0, i)),
        ),
        compiler_params=pltpu.CompilerParams(
            dimension_semantics=("parallel",),
            vmem_limit_bytes=vmem_limit),
    )(xs, xn, ws, wn)
    return out                                               # [E, N] PyTorch layout


if __name__ == "__main__":
    key = jax.random.PRNGKey(0)
    k_feat, k_w, k_n1, k_a1, k_n2, k_a2 = jax.random.split(key, 6)

    # Synthetic graph / module configuration (small shapes)
    num_nodes_total = 64   # size of the feature (embedding) table
    feat_dim = 32          # self.feat_dim
    embed_dim = 32         # self.embed_dim
    num_sample = 10        # self.num_sample (default)
    batch = 8              # len(nodes)

    # nn.Embedding-equivalent feature table
    feature_table = jax.random.normal(
        k_feat, (num_nodes_total, feat_dim), dtype=jnp.float32)

    # Xavier-uniform weight: [embed_dim, 2*feat_dim]
    two_f = 2 * feat_dim
    bound = (6.0 / (embed_dim + two_f)) ** 0.5
    weight = jax.random.uniform(
        k_w, (embed_dim, two_f), minval=-bound, maxval=bound, dtype=jnp.float32)

    def run_case(k_nodes, k_adj, n):
        nodes = jax.random.randint(k_nodes, (n,), 0, num_nodes_total)
        neigh_idx = jax.random.randint(k_adj, (n, num_sample), 0, num_nodes_total)

        # Aggregator (mean over sampled neighbors) + embedding lookup stay in
        # XLA: gather + mean + bf16 cast fuse, so no [N, S, F] HBM round-trip.
        # TODO(synk): the Python adj_lists/random.sample neighbor selection has
        # no in-kernel equivalent; sampled indices are provided as data.
        self_feats = feature_table[nodes]                        # [N, F]
        neigh_mean = jnp.mean(feature_table[neigh_idx], axis=1)  # [N, F]

        out = jax.block_until_ready(encoder_forward(self_feats, neigh_mean, weight))

        # Pure-JAX references of the PyTorch forward (gcn=False).
        combined_f32 = jnp.concatenate([self_feats, neigh_mean], axis=1)  # [N, 2F]
        ref_f32 = jnp.maximum(weight @ combined_f32.T, 0.0)               # [E, N]
        combined_bf = combined_f32.astype(jnp.bfloat16).astype(jnp.float32)
        w_bf = weight.astype(jnp.bfloat16).astype(jnp.float32)
        ref_bf = jnp.maximum(w_bf @ combined_bf.T, 0.0)

        assert out.shape == (embed_dim, n)
        assert jnp.allclose(out, ref_bf, atol=1e-4, rtol=1e-4)
        assert jnp.allclose(out, ref_f32, atol=5e-2, rtol=5e-2)

    run_case(k_n1, k_a1, batch)   # single-block path (tile == N)
    run_case(k_n2, k_a2, 300)     # multi-block path with a partial boundary block
    print("KERNEL_OK")
</pallas_src>

<mosaic_0001>
module attributes {stable_mosaic.version = 11 : i64} {
  func.func @encoder_kernel(%arg0: i32, %arg1: memref<8x32xbf16, #tpu.memory_space<vmem>>, %arg2: memref<8x32xbf16, #tpu.memory_space<vmem>>, %arg3: memref<32x32xbf16, #tpu.memory_space<vmem>>, %arg4: memref<32x32xbf16, #tpu.memory_space<vmem>>, %arg5: memref<32x8xf32, #tpu.memory_space<vmem>>) attributes {dimension_semantics = [#tpu.dimension_semantics<parallel>], iteration_bounds = array<i64: 1>, scalar_prefetch = 0 : i64, scratch_operands = 0 : i64, tpu.core_type = #tpu.core_type<tc>, window_params = [{transform_indices = @transform_0, window_bounds = array<i64: 8, 32>}, {transform_indices = @transform_1, window_bounds = array<i64: 8, 32>}, {pipeline_mode = #tpu.pipeline_mode<synchronous>, transform_indices = @transform_2, window_bounds = array<i64: 32, 32>}, {pipeline_mode = #tpu.pipeline_mode<synchronous>, transform_indices = @transform_3, window_bounds = array<i64: 32, 32>}, {transform_indices = @transform_4, window_bounds = array<i64: 32, 8>}]} {
    %c0 = arith.constant 0 : index
    %c0_0 = arith.constant 0 : index
    %0 = vector.load %arg3[%c0, %c0_0] : memref<32x32xbf16, #tpu.memory_space<vmem>>, vector<32x32xbf16>
    %c0_1 = arith.constant 0 : index
    %c0_2 = arith.constant 0 : index
    %1 = vector.load %arg1[%c0_1, %c0_2] : memref<8x32xbf16, #tpu.memory_space<vmem>>, vector<8x32xbf16>
    %cst = arith.constant dense<0.000000e+00> : vector<32x8xf32>
    %2 = tpu.matmul %0, %1, %cst {dimension_numbers = #tpu.dot_dimension_numbers<[1], [1], [0], [0], [0, 0, 1, 0], [], []>} : vector<32x32xbf16>, vector<8x32xbf16>, vector<32x8xf32> -> vector<32x8xf32>
    %c0_3 = arith.constant 0 : index
    %c0_4 = arith.constant 0 : index
    %3 = vector.load %arg4[%c0_3, %c0_4] : memref<32x32xbf16, #tpu.memory_space<vmem>>, vector<32x32xbf16>
    %c0_5 = arith.constant 0 : index
    %c0_6 = arith.constant 0 : index
    %4 = vector.load %arg2[%c0_5, %c0_6] : memref<8x32xbf16, #tpu.memory_space<vmem>>, vector<8x32xbf16>
    %cst_7 = arith.constant dense<0.000000e+00> : vector<32x8xf32>
    %5 = tpu.matmul %3, %4, %cst_7 {dimension_numbers = #tpu.dot_dimension_numbers<[1], [1], [0], [0], [0, 0, 1, 0], [], []>} : vector<32x32xbf16>, vector<8x32xbf16>, vector<32x8xf32> -> vector<32x8xf32>
    %6 = arith.addf %2, %5 : vector<32x8xf32>
    %cst_8 = arith.constant 0.000000e+00 : f32
    %7 = vector.broadcast %cst_8 : f32 to vector<32x8xf32>
    %8 = arith.maximumf %6, %7 : vector<32x8xf32>
    %c0_9 = arith.constant 0 : index
    %c0_10 = arith.constant 0 : index
    %9 = vector.load %arg5[%c0_9, %c0_10] : memref<32x8xf32, #tpu.memory_space<vmem>>, vector<32x8xf32>
    tpu.vector_store %arg5[%c0_9, %c0_10], %8 {strides = array<i32>} : memref<32x8xf32, #tpu.memory_space<vmem>>, vector<32x8xf32>,
    return
  }
  func.func @transform_0(%arg0: i32) -> (i32, i32) {
    %c0_i32 = arith.constant 0 : i32
    %c0_i32_0 = arith.constant 0 : i32
    return %arg0, %c0_i32 : i32, i32
  }
  func.func @transform_1(%arg0: i32) -> (i32, i32) {
    %c0_i32 = arith.constant 0 : i32
    %c0_i32_0 = arith.constant 0 : i32
    return %arg0, %c0_i32 : i32, i32
  }
  func.func @transform_2(%arg0: i32) -> (i32, i32) {
    %c0_i32 = arith.constant 0 : i32
    %c0_i32_0 = arith.constant 0 : i32
    %c0_i32_1 = arith.constant 0 : i32
    return %c0_i32, %c0_i32_0 : i32, i32
  }
  func.func @transform_3(%arg0: i32) -> (i32, i32) {
    %c0_i32 = arith.constant 0 : i32
    %c0_i32_0 = arith.constant 0 : i32
    %c0_i32_1 = arith.constant 0 : i32
    return %c0_i32, %c0_i32_0 : i32, i32
  }
  func.func @transform_4(%arg0: i32) -> (i32, i32) {
    %c0_i32 = arith.constant 0 : i32
    %c0_i32_0 = arith.constant 0 : i32
    return %c0_i32, %arg0 : i32, i32
  }
}

</mosaic_0001>

<llo_original>
// kernel: tpu_custom_call.1
$region0: #{tpu_custom_call.1}
  #allocation0 [shape = 'u32[]', space=smem, size = 0x4, offset = 0x4, fixed_abs, tag = 'smem constant byte address 0x4 - core index']
  #allocation1 [shape = 'u32[144,128]{1,0:T(1,128)}', space=vmem, size = 0x12000, scoped, tag = 'internal scratch']
  %s0 = inlined_call_operand.hbm [shape: bf16[8,32], index: 0, kind: input, shape index: {}]
  %s1 = inlined_call_operand.hbm [shape: bf16[8,32], index: 1, kind: input, shape index: {}]
  %s2 = inlined_call_operand.hbm [shape: bf16[32,32], index: 2, kind: input, shape index: {}]
  %s3 = inlined_call_operand.hbm [shape: bf16[32,32], index: 3, kind: input, shape index: {}]
  %s4 = inlined_call_operand.vmem [shape: f32[32,8], index: 4, kind: output, shape index: {}]
  %s5 = sld [smem:[#allocation0]]
  $region42: #{tpu_custom_call.1} parent=0
    _
  %s7 = ssub.s32 1, %s5
  %s8 = scalar_select 0, %s7, %s5
  $region1: #{tpu_custom_call.1} parent=0
    #allocation2 [shape = 'u8[2048]{0}', space=vmem, size = 0x800, scoped, tag = 'input window, operand 0, single buffered']
    #allocation3 [shape = 's32[1]{0}', space=sflag, size = 0x4, scoped, tag = 'scoped memory for tpu_custom_call.1']
    #allocation4 [shape = 'u8[2048]{0}', space=vmem, size = 0x800, scoped, tag = 'input window, operand 1, single buffered']
    #allocation5 [shape = 's32[1]{0}', space=sflag, size = 0x4, scoped, tag = 'scoped memory for tpu_custom_call.1']
    #allocation6 [shape = 'u8[8192]{0}', space=vmem, size = 0x2000, scoped, tag = 'input window, operand 2, single buffered']
    #allocation7 [shape = 'u8[8192]{0}', space=vmem, size = 0x2000, scoped, tag = 'input window, operand 3, single buffered']
    #allocation8 [shape = 's32[1]{0}', space=sflag, size = 0x4, scoped, tag = 'scoped memory for tpu_custom_call.1']
    %9 = vsyncpa [#allocation3], 0
    %10 = vsyncpa [#allocation5], 0
    %11 = vsyncpa [#allocation8], 0
    // Predicated region
    $region2: #{tpu_custom_call.1} parent=1 // pred_check
      _
    $region3: #{tpu_custom_call.1} parent=1 // pred_check_branch
      %13 = sbr.rel (0) target = $region5
    $region4: #{tpu_custom_call.1} parent=1 // pred_region
      %s15 = ssub.s32 64, 64
      %16 = vsyncadd [#allocation3], %s15
      %s18 = sshll.u32 [#allocation2], 4
      %s19 = int_to_ptr.vmem [resolvable:$true] %s18
      %21 = dma.hbm_to_vmem [thread:$0]  %s0, 64, %s19, [#allocation3]
    $region5: #{tpu_custom_call.1} parent=1 // pred_fallthru
      _
    // Predicated region
    $region6: #{tpu_custom_call.1} parent=1 // pred_check
      _
    $region7: #{tpu_custom_call.1} parent=1 // pred_check_branch
      %23 = sbr.rel (0) target = $region9
    $region8: #{tpu_custom_call.1} parent=1 // pred_region
      %s25 = ssub.s32 64, 64
      %26 = vsyncadd [#allocation5], %s25
      %s28 = sshll.u32 [#allocation4], 4
      %s29 = int_to_ptr.vmem [resolvable:$true] %s28
      %31 = dma.hbm_to_vmem [thread:$0]  %s1, 64, %s29, [#allocation5]
    $region9: #{tpu_custom_call.1} parent=1 // pred_fallthru
      _
    // Predicated region
    $region10: #{tpu_custom_call.1} parent=1 // pred_check
      _
    $region11: #{tpu_custom_call.1} parent=1 // pred_check_branch
      %33 = sbr.rel (0) target = $region13
    $region12: #{tpu_custom_call.1} parent=1 // pred_region
      %s35 = ssub.s32 256, 256
      %36 = vsyncadd [#allocation5], %s35
      %s37 = sshll.u32 [#allocation6], 4
      %s38 = int_to_ptr.vmem [resolvable:$true] %s37
      %43 = dma.hbm_to_vmem [thread:$0]  %s2, 256, %s38, [#allocation5], 64, 64, 4
    $region13: #{tpu_custom_call.1} parent=1 // pred_fallthru
      _
    // Predicated region
    $region14: #{tpu_custom_call.1} parent=1 // pred_check
      _
    $region15: #{tpu_custom_call.1} parent=1 // pred_check_branch
      %45 = sbr.rel (0) target = $region17
    $region16: #{tpu_custom_call.1} parent=1 // pred_region
      %s47 = ssub.s32 256, 256
      %48 = vsyncadd [#allocation8], %s47
      %s49 = sshll.u32 [#allocation7], 4
      %s50 = int_to_ptr.vmem [resolvable:$true] %s49
      %55 = dma.hbm_to_vmem [thread:$0]  %s3, 256, %s50, [#allocation8], 64, 64, 4
    $region17: #{tpu_custom_call.1} parent=1 // pred_fallthru
      _
    // Predicated region
    $region18: #{tpu_custom_call.1} parent=1 // pred_check
      _
    $region19: #{tpu_custom_call.1} parent=1 // pred_check_branch
      %57 = sbr.rel (0) target = $region21
    $region20: #{tpu_custom_call.1} parent=1 // pred_region
      %58 = dma.done [#allocation3], 64
    $region21: #{tpu_custom_call.1} parent=1 // pred_fallthru
      _
    // Predicated region
    $region22: #{tpu_custom_call.1} parent=1 // pred_check
      _
    $region23: #{tpu_custom_call.1} parent=1 // pred_check_branch
      %60 = sbr.rel (0) target = $region25
    $region24: #{tpu_custom_call.1} parent=1 // pred_region
      %61 = dma.done [#allocation5], 64
    $region25: #{tpu_custom_call.1} parent=1 // pred_fallthru
      _
    // Predicated region
    $region26: #{tpu_custom_call.1} parent=1 // pred_check
      _
    $region27: #{tpu_custom_call.1} parent=1 // pred_check_branch
      %63 = sbr.rel (0) target = $region29
    $region28: #{tpu_custom_call.1} parent=1 // pred_region
      %64 = dma.done [#allocation5], 256
    $region29: #{tpu_custom_call.1} parent=1 // pred_fallthru
      _
    // Predicated region
    $region30: #{tpu_custom_call.1} parent=1 // pred_check
      _
    $region31: #{tpu_custom_call.1} parent=1 // pred_check_branch
      %66 = sbr.rel (0) target = $region33
    $region32: #{tpu_custom_call.1} parent=1 // pred_region
      %67 = dma.done [#allocation8], 256
    $region33: #{tpu_custom_call.1} parent=1 // pred_fallthru
      _
    %v69 = vld [vmem:[#allocation6] sm:$0xf]
    %v70 = vld [vmem:[#allocation6 + $0x4] sm:$0xf]
    %v71 = vld [vmem:[#allocation6 + $0x8] sm:$0xf]
    %v72 = vld [vmem:[#allocation6 + $0xc] sm:$0xf]
    %v73 = vld [vmem:[#allocation2] sm:$0xf]
    %v74 = vld [vmem:[#allocation7] sm:$0xf]
    %v75 = vld [vmem:[#allocation7 + $0x4] sm:$0xf]
    %v76 = vld [vmem:[#allocation7 + $0x8] sm:$0xf]
    %v77 = vld [vmem:[#allocation7 + $0xc] sm:$0xf]
    %v78 = vld [vmem:[#allocation4] sm:$0xf]
    %v83 = vunpack.c.l.b16 %v74
    %v84 = vunpack.c.l.b16 %v75
    %v85 = vunpack.c.l.b16 %v76
    %v86 = vunpack.c.l.b16 %v77
    %v87 = vpack.c.b16 %v84, %v83
    %v88 = vpack.c.b16 %v86, %v85
    %vm89 = vcmask 261120
    %v91 = vsel %vm89, %v87, 0
    %v94 = vsel %vm89, %v88, 0
    %v97 = vsel %vm89, %v78, 0
    %99 = vmatprep.subr.bf16.mxu0 0
    %100 = vmatpush1.bf16.xpose.msra.mxu0 0
    %101 = vmatprep.subr.bf16.mxu0 0
    %102 = vmatpush1.bf16.xpose.msra.mxu0 0
    %103 = vmatprep.subr.bf16.mxu0 0
    %104 = vmatpush1.bf16.xpose.msra.mxu0 0
    %105 = vmatprep.subr.bf16.mxu0 0
    %106 = vmatpush1.bf16.xpose.msra.mxu0 0
    %107 = vmatprep.subr.bf16.mxu0 0
    %108 = vmatpush1.bf16.xpose.msra.mxu0 0
    %109 = vmatprep.subr.bf16.mxu0 0
    %110 = vmatpush1.bf16.xpose.msra.mxu0 0
    %111 = vmatprep.subr.bf16.mxu0 0
    %112 = vmatpush1.bf16.xpose.msra.mxu0 0
    %113 = vmatprep.subr.bf16.mxu0 0
    %114 = vmatpush1.bf16.xpose.msra.mxu0 %v97
    %115 = vmatprep.subr.bf16.mxu0 0
    %116 = vmatpush2.bf16.xpose.msra.mxu0 0
    %117 = vmatprep.subr.bf16.mxu0 0
    %118 = vmatpush2.bf16.xpose.msra.mxu0 0
    %119 = vmatprep.subr.bf16.mxu0 0
    %120 = vmatpush2.bf16.xpose.msra.mxu0 0
    %121 = vmatprep.subr.bf16.mxu0 0
    %122 = vmatpush2.bf16.xpose.msra.mxu0 0
    %123 = vmatprep.subr.bf16.mxu0 0
    %124 = vmatpush2.bf16.xpose.msra.mxu0 0
    %125 = vmatprep.subr.bf16.mxu0 0
    %126 = vmatpush2.bf16.xpose.msra.mxu0 0
    %127 = vmatprep.subr.bf16.mxu0 0
    %128 = vmatpush2.bf16.xpose.msra.mxu0 0
    %129 = vmatprep.subr.bf16.mxu0 0
    %130 = vmatpush2.bf16.xpose.msra.mxu0 0
    %131 = vmatprep.mubr.bf16.mxu0 0
    %132 = vmatmul.mubr.bf16.gmra.mxu0 %v91
    %v133 = vpop.f32.mrf.mxu0
    %v134 = vadd.f32 0.0, %v133
    %v135 = vpop.f32.mrf.mxu0
    %v136 = vpop.f32.mrf.mxu0
    %v137 = vadd.f32 0.0, %v136
    %v138 = vpop.f32.mrf.mxu0
    %139 = vmatprep.mubr.bf16.mxu0 0
    %140 = vmatmul.mubr.bf16.gmra.mxu0 %v94
    %v141 = vpop.f32.mrf.mxu0
    %v142 = vadd.f32 0.0, %v141
    %v143 = vpop.f32.mrf.mxu0
    %v144 = vpop.f32.mrf.mxu0
    %v145 = vadd.f32 0.0, %v144
    %v146 = vpop.f32.mrf.mxu0
    %147 = vdwg.mxu0
    %v152 = vunpack.c.l.b16 %v69
    %v153 = vunpack.c.l.b16 %v70
    %v154 = vunpack.c.l.b16 %v71
    %v155 = vunpack.c.l.b16 %v72
    %v156 = vpack.c.b16 %v153, %v152
    %v157 = vpack.c.b16 %v155, %v154
    %v159 = vsel %vm89, %v156, 0
    %v162 = vsel %vm89, %v157, 0
    %v165 = vsel %vm89, %v73, 0
    %167 = vmatprep.subr.bf16.mxu0 0
    %168 = vmatpush1.bf16.xpose.msra.mxu0 0
    %169 = vmatprep.subr.bf16.mxu0 0
    %170 = vmatpush1.bf16.xpose.msra.mxu0 0
    %171 = vmatprep.subr.bf16.mxu0 0
    %172 = vmatpush1.bf16.xpose.msra.mxu0 0
    %173 = vmatprep.subr.bf16.mxu0 0
    %174 = vmatpush1.bf16.xpose.msra.mxu0 0
    %175 = vmatprep.subr.bf16.mxu0 0
    %176 = vmatpush1.bf16.xpose.msra.mxu0 0
    %177 = vmatprep.subr.bf16.mxu0 0
    %178 = vmatpush1.bf16.xpose.msra.mxu0 0
    %179 = vmatprep.subr.bf16.mxu0 0
    %180 = vmatpush1.bf16.xpose.msra.mxu0 0
    %181 = vmatprep.subr.bf16.mxu0 0
    %182 = vmatpush1.bf16.xpose.msra.mxu0 %v165
    %183 = vmatprep.subr.bf16.mxu0 0
    %184 = vmatpush2.bf16.xpose.msra.mxu0 0
    %185 = vmatprep.subr.bf16.mxu0 0
    %186 = vmatpush2.bf16.xpose.msra.mxu0 0
    %187 = vmatprep.subr.bf16.mxu0 0
    %188 = vmatpush2.bf16.xpose.msra.mxu0 0
    %189 = vmatprep.subr.bf16.mxu0 0
    %190 = vmatpush2.bf16.xpose.msra.mxu0 0
    %191 = vmatprep.subr.bf16.mxu0 0
    %192 = vmatpush2.bf16.xpose.msra.mxu0 0
    %193 = vmatprep.subr.bf16.mxu0 0
    %194 = vmatpush2.bf16.xpose.msra.mxu0 0
    %195 = vmatprep.subr.bf16.mxu0 0
    %196 = vmatpush2.bf16.xpose.msra.mxu0 0
    %197 = vmatprep.subr.bf16.mxu0 0
    %198 = vmatpush2.bf16.xpose.msra.mxu0 0
    %199 = vmatprep.mubr.bf16.mxu0 0
    %200 = vmatmul.mubr.bf16.gmra.mxu0 %v159
    %v201 = vpop.f32.mrf.mxu0
    %v202 = vadd.f32 %v134, %v201
    %v203 = vpop.f32.mrf.mxu0
    %v204 = vpop.f32.mrf.mxu0
    %v205 = vadd.f32 %v137, %v204
    %v206 = vpop.f32.mrf.mxu0
    %207 = vmatprep.mubr.bf16.mxu0 0
    %208 = vmatmul.mubr.bf16.gmra.mxu0 %v162
    %v209 = vpop.f32.mrf.mxu0
    %v210 = vadd.f32 %v142, %v209
    %v211 = vpop.f32.mrf.mxu0
    %v212 = vpop.f32.mrf.mxu0
    %v213 = vadd.f32 %v145, %v212
    %v214 = vpop.f32.mrf.mxu0
    %215 = vdwg.mxu0
    %v216 = vmax.f32 %v202, 0.0
    %v217 = vmax.f32 %v205, 0.0
    %v218 = vmax.f32 %v210, 0.0
    %v219 = vmax.f32 %v213, 0.0
    %vm220 = vcmask 64512
    %221 = vst.msk [vmem:[%s4] sm:$0xff] %vm220, %v216
    %222 = vst.msk [vmem:[%s4 + $0x8] sm:$0xff] %vm220, %v217
    %223 = vst.msk [vmem:[%s4 + $0x10] sm:$0xff] %vm220, %v218
    %224 = vst.msk [vmem:[%s4 + $0x18] sm:$0xff] %vm220, %v219
    // Predicated region
    $region34: #{tpu_custom_call.1} parent=1 // pred_check
      _
    $region35: #{tpu_custom_call.1} parent=1 // pred_check_branch
      %226 = sbr.rel (0) target = $region37
    $region36: #{tpu_custom_call.1} parent=1 // pred_region
      _
    $region37: #{tpu_custom_call.1} parent=1 // pred_fallthru
      _
    // Predicated region
    $region38: #{tpu_custom_call.1} parent=1 // pred_check
      _
    $region39: #{tpu_custom_call.1} parent=1 // pred_check_branch
      %228 = sbr.rel (0) target = $region41
    $region40: #{tpu_custom_call.1} parent=1 // pred_region
      _
    $region41: #{tpu_custom_call.1} parent=1 // pred_fallthru
      _
    %229 = vsyncpa [#allocation3], 1
    %230 = vsyncpa [#allocation5], 1
    %231 = vsyncpa [#allocation8], 1

</llo_original>
